<compile_context>
chip_gen: v6e
topology: v6e:2x2x1
jax: 0.10.0
libtpu: 0.0.40
codegen_flags: <defaults>
</compile_context>

<pallas_src>
import functools

import jax
import jax.numpy as jnp
from jax.experimental import pallas as pl
from jax.experimental.pallas import tpu as pltpu

LOG_STD_BOUNDS = (-10.0, 2.0)
LN_EPS = 1e-5


def _round_up(x, m):
    return (x + m - 1) // m * m


def _actor_kernel(obs_ref,
                  w1_ref, b1_ref, ln_g_ref, ln_b_ref,
                  w2_ref, b2_ref,
                  wh_ref, bh_ref,
                  out_ref,
                  *, half, log_std_min, log_std_max):
    """One batch tile: trunk (Linear-LN-Tanh) -> policy (Linear-ReLU-Linear).

    The final Linear is packed: lanes [0, half) hold the mu columns and lanes
    [half, 2*half) hold the log_std columns, so a single MXU dot and a single
    lane-dense store produce both heads.
    """
    # Cast activations to the matmul/weight dtype (bf16 on v6e/v7x, f32 else);
    # accumulation and all elementwise math stay in f32.
    x = obs_ref[...].astype(w1_ref.dtype)

    # ---- trunk: Linear -> LayerNorm -> Tanh ------------------------------
    h = jnp.dot(x, w1_ref[...], preferred_element_type=jnp.float32)
    h = h + b1_ref[...]                                        # [TB, F]
    mean = jnp.mean(h, axis=-1, keepdims=True)
    mean_sq = jnp.mean(h * h, axis=-1, keepdims=True)
    var = jnp.maximum(mean_sq - mean * mean, 0.0)              # clamp cancellation
    inv = jax.lax.rsqrt(var + LN_EPS)                          # EUP
    h = (h - mean) * inv * ln_g_ref[...] + ln_b_ref[...]
    h = jnp.tanh(h)

    # ---- policy: Linear -> ReLU -> packed head Linear ---------------------
    h2 = jnp.dot(h.astype(w2_ref.dtype), w2_ref[...],
                 preferred_element_type=jnp.float32)
    h2 = jnp.maximum(h2 + b2_ref[...], 0.0)                    # ReLU

    out = jnp.dot(h2.astype(wh_ref.dtype), wh_ref[...],
                  preferred_element_type=jnp.float32)
    out = out + bh_ref[...]                                    # [TB, 2*half]

    # log_std half: tanh squash -> rescale to [log_std_min, log_std_max] -> exp.
    # NOTE: zero-padded log_std lanes evaluate exp(midpoint) on zero inputs;
    # harmless -- the wrapper slices them away.  Do not rely on them being zero.
    lane = jax.lax.broadcasted_iota(jnp.int32, out.shape, 1)
    ls = log_std_min + 0.5 * (log_std_max - log_std_min) * (jnp.tanh(out) + 1.0)
    std = jnp.exp(ls)

    # One lane-dense full-width (multiple-of-128) store; no masked writes.
    out_ref[...] = jnp.where(lane >= half, std, out).astype(out_ref.dtype)


def prepare_actor_params(params, *, action_dim, matmul_dtype=jnp.float32):
    """One-time parameter prep (call once per param set, NOT per forward).

    Packs the head Linear into a single lane-dense slab (mu at lanes [0, half),
    log_std at lanes [half, 2*half)) and casts matmul weights to `matmul_dtype`
    (use jnp.bfloat16 on v6e/v7x).  Biases / LayerNorm params stay f32.
    """
    H = params["w2"].shape[1]
    half = _round_up(max(action_dim, 1), 64)     # 2*half is a multiple of 128 lanes
    out_w = 2 * half

    w3 = params["w3"].astype(jnp.float32)
    b3 = params["b3"].astype(jnp.float32).reshape(1, -1)
    w_head = jnp.zeros((H, out_w), jnp.float32)
    w_head = w_head.at[:, :action_dim].set(w3[:, :action_dim])
    w_head = w_head.at[:, half:half + action_dim].set(w3[:, action_dim:2 * action_dim])
    b_head = jnp.zeros((1, out_w), jnp.float32)
    b_head = b_head.at[:, :action_dim].set(b3[:, :action_dim])
    b_head = b_head.at[:, half:half + action_dim].set(b3[:, action_dim:2 * action_dim])

    md = jnp.dtype(matmul_dtype)
    return {
        "w1": params["w1"].astype(md),
        "b1": params["b1"].astype(jnp.float32).reshape(1, -1),
        "ln_g": params["ln_g"].astype(jnp.float32).reshape(1, -1),
        "ln_b": params["ln_b"].astype(jnp.float32).reshape(1, -1),
        "w2": params["w2"].astype(md),
        "b2": params["b2"].astype(jnp.float32).reshape(1, -1),
        "w_head": w_head.astype(md),
        "b_head": b_head,
    }


def _build_call(kernel, *, B_pad, TILE_B, obs_dim, F, H, out_w, out_dtype,
                cost, single_buffer_weights):
    const = lambda i: (0, 0)
    row = lambda i: (i, 0)
    if single_buffer_weights:
        # Constant-index blocks never re-DMA; the 2nd pipeline buffer is VMEM waste.
        wspec = lambda shape: pl.BlockSpec(shape, const, pipeline_mode=pl.Buffered(1))
    else:
        wspec = lambda shape: pl.BlockSpec(shape, const)
    return pl.pallas_call(
        kernel,
        out_shape=jax.ShapeDtypeStruct((B_pad, out_w), out_dtype),
        grid=(B_pad // TILE_B,),
        in_specs=[
            pl.BlockSpec((TILE_B, obs_dim), row),   # obs tile (double-buffered)
            wspec((obs_dim, F)),                    # w1
            wspec((1, F)),                          # b1
            wspec((1, F)),                          # ln_g
            wspec((1, F)),                          # ln_b
            wspec((F, H)),                          # w2
            wspec((1, H)),                          # b2
            wspec((H, out_w)),                      # w_head (mu | log_std packed)
            wspec((1, out_w)),                      # b_head
        ],
        out_specs=pl.BlockSpec((TILE_B, out_w), row),
        compiler_params=pltpu.CompilerParams(
            dimension_semantics=("parallel",)),     # megacore-shard batch on v7x
        cost_estimate=cost,
    )


def diag_gaussian_actor_forward(obs, prep, *, action_dim,
                                log_std_bounds=LOG_STD_BOUNDS,
                                tile_b=512, out_dtype=jnp.float32):
    """Returns (mu, std): parameters of the diag-Gaussian policy distribution.

    `prep` must come from prepare_actor_params (padded/packed weights cached
    outside the per-call path).
    """
    B, obs_dim = obs.shape
    F = prep["w1"].shape[1]
    H = prep["w2"].shape[1]
    out_w = prep["w_head"].shape[1]
    half = out_w // 2

    # Batch tiling: aim for >= 2 grid steps (v7x has 2 TensorCores on the
    # "parallel" axis) while capping at tile_b so single-core v5e/v6e amortize
    # the ~0.35us/step pipeline overhead with large tiles.
    TILE_B = max(8, min(_round_up(int(tile_b), 8), _round_up(pl.cdiv(B, 2), 8)))
    B_pad = _round_up(B, TILE_B)
    obs_p = obs if B_pad == B else jnp.pad(obs, ((0, B_pad - B), (0, 0)))

    kernel = functools.partial(
        _actor_kernel,
        half=half,
        log_std_min=float(log_std_bounds[0]),
        log_std_max=float(log_std_bounds[1]),
    )

    wsize = jnp.dtype(prep["w1"].dtype).itemsize
    flops = 2 * B_pad * (obs_dim * F + F * H + H * out_w)
    transcendentals = B_pad * (F + 2 * out_w)           # trunk tanh + head tanh/exp
    bytes_accessed = (4 * B_pad * obs_dim
                      + wsize * (obs_dim * F + F * H + H * out_w)
                      + 4 * (4 * F + H + out_w)
                      + jnp.dtype(out_dtype).itemsize * B_pad * out_w)
    cost = pl.CostEstimate(flops=flops, transcendentals=transcendentals,
                           bytes_accessed=bytes_accessed)

    args = (obs_p,
            prep["w1"], prep["b1"], prep["ln_g"], prep["ln_b"],
            prep["w2"], prep["b2"], prep["w_head"], prep["b_head"])
    common = dict(B_pad=B_pad, TILE_B=TILE_B, obs_dim=obs_dim, F=F, H=H,
                  out_w=out_w, out_dtype=out_dtype, cost=cost)
    try:
        out = _build_call(kernel, single_buffer_weights=True, **common)(*args)
    except Exception:
        # pl.Buffered(1) not supported by this jax version -> default buffering.
        out = _build_call(kernel, single_buffer_weights=False, **common)(*args)

    # Slice away batch padding and the zero-padded lanes (tile-aligned, cheap).
    mu = out[:B, :action_dim]
    std = out[:B, half:half + action_dim]
    return mu, std


def init_params(key, obs_dim, feature_dim, hidden_dim, action_dim):
    """Deterministic synthetic init (scaled normals)."""
    ks = jax.random.split(key, 6)

    def lin(kw, kb, fan_in, fan_out):
        w = jax.random.normal(kw, (fan_in, fan_out), jnp.float32) / jnp.sqrt(fan_in)
        b = 0.01 * jax.random.normal(kb, (1, fan_out), jnp.float32)
        return w, b

    w1, b1 = lin(ks[0], ks[1], obs_dim, feature_dim)
    w2, b2 = lin(ks[2], ks[3], feature_dim, hidden_dim)
    w3, b3 = lin(ks[4], ks[5], hidden_dim, 2 * action_dim)
    return {
        "w1": w1, "b1": b1,
        "ln_g": jnp.ones((1, feature_dim), jnp.float32),
        "ln_b": jnp.zeros((1, feature_dim), jnp.float32),
        "w2": w2, "b2": b2,
        "w3": w3, "b3": b3,
    }


def _reference_forward(obs, params, action_dim, log_std_bounds=LOG_STD_BOUNDS):
    h = obs @ params["w1"] + params["b1"]
    mean = h.mean(-1, keepdims=True)
    var = ((h - mean) ** 2).mean(-1, keepdims=True)
    h = (h - mean) / jnp.sqrt(var + LN_EPS) * params["ln_g"] + params["ln_b"]
    h = jnp.tanh(h)
    h = jax.nn.relu(h @ params["w2"] + params["b2"])
    out = h @ params["w3"] + params["b3"]
    mu, log_std = out[:, :action_dim], out[:, action_dim:]
    log_std = jnp.tanh(log_std)
    lo, hi = log_std_bounds
    log_std = lo + 0.5 * (hi - lo) * (log_std + 1.0)
    return mu, jnp.exp(log_std)


if __name__ == "__main__":
    # obs_type='states' -> feature_dim := hidden_dim
    B, OBS_DIM, HIDDEN_DIM, ACTION_DIM = 8, 32, 32, 4
    FEATURE_DIM = HIDDEN_DIM

    key = jax.random.PRNGKey(0)
    k_obs, k_par = jax.random.split(key)
    obs = jax.random.normal(k_obs, (B, OBS_DIM), jnp.float32)
    params = init_params(k_par, OBS_DIM, FEATURE_DIM, HIDDEN_DIM, ACTION_DIM)

    # ---- f32 matmul path: exact parity with the reference -----------------
    prep32 = prepare_actor_params(params, action_dim=ACTION_DIM,
                                  matmul_dtype=jnp.float32)
    mu, std = diag_gaussian_actor_forward(obs, prep32, action_dim=ACTION_DIM)
    jax.block_until_ready((mu, std))
    mu_ref, std_ref = _reference_forward(obs, params, ACTION_DIM)
    assert mu.shape == (B, ACTION_DIM) and std.shape == (B, ACTION_DIM)
    assert jnp.allclose(mu, mu_ref, atol=1e-4, rtol=1e-4)
    assert jnp.allclose(std, std_ref, atol=1e-4, rtol=1e-4)
    assert not (jnp.isnan(mu).any() or jnp.isnan(std).any())

    # ---- multi-tile batch (grid > 1, padded B) -----------------------------
    B2 = 1000
    obs2 = jax.random.normal(jax.random.PRNGKey(1), (B2, OBS_DIM), jnp.float32)
    mu2, std2 = diag_gaussian_actor_forward(obs2, prep32, action_dim=ACTION_DIM)
    jax.block_until_ready((mu2, std2))
    mu2_ref, std2_ref = _reference_forward(obs2, params, ACTION_DIM)
    assert mu2.shape == (B2, ACTION_DIM) and std2.shape == (B2, ACTION_DIM)
    assert jnp.allclose(mu2, mu2_ref, atol=1e-4, rtol=1e-4)
    assert jnp.allclose(std2, std2_ref, atol=1e-4, rtol=1e-4)

    # ---- bf16-weight MXU path (recommended on v6e/v7x) ---------------------
    # Reduced-precision matmul inputs, f32 accumulation; checked loosely against
    # the f32 reference (the f32 path above validates exact semantics).
    prep_bf16 = prepare_actor_params(params, action_dim=ACTION_DIM,
                                     matmul_dtype=jnp.bfloat16)
    B3 = 64
    obs3 = jax.random.normal(jax.random.PRNGKey(2), (B3, OBS_DIM), jnp.float32)
    mu3, std3 = diag_gaussian_actor_forward(obs3, prep_bf16, action_dim=ACTION_DIM)
    jax.block_until_ready((mu3, std3))
    mu3_ref, std3_ref = _reference_forward(obs3, params, ACTION_DIM)
    assert mu3.shape == (B3, ACTION_DIM) and std3.shape == (B3, ACTION_DIM)
    assert not (jnp.isnan(mu3).any() or jnp.isnan(std3).any())
    assert jnp.allclose(mu3, mu3_ref, atol=8e-2, rtol=8e-2)
    assert jnp.allclose(std3, std3_ref, atol=5e-2, rtol=3e-1)

    print("KERNEL_OK")
</pallas_src>

<mosaic_0001>
module attributes {stable_mosaic.version = 11 : i64} {
  func.func @_actor_kernel(%arg0: i32, %arg1: memref<8x32xf32, #tpu.memory_space<vmem>>, %arg2: memref<32x32xf32, #tpu.memory_space<vmem>>, %arg3: memref<1x32xf32, #tpu.memory_space<vmem>>, %arg4: memref<1x32xf32, #tpu.memory_space<vmem>>, %arg5: memref<1x32xf32, #tpu.memory_space<vmem>>, %arg6: memref<32x32xf32, #tpu.memory_space<vmem>>, %arg7: memref<1x32xf32, #tpu.memory_space<vmem>>, %arg8: memref<32x128xf32, #tpu.memory_space<vmem>>, %arg9: memref<1x128xf32, #tpu.memory_space<vmem>>, %arg10: memref<8x128xf32, #tpu.memory_space<vmem>>) attributes {dimension_semantics = [#tpu.dimension_semantics<parallel>], iteration_bounds = array<i64: 1>, scalar_prefetch = 0 : i64, scratch_operands = 0 : i64, tpu.core_type = #tpu.core_type<tc>, window_params = [{transform_indices = @transform_0, window_bounds = array<i64: 8, 32>}, {pipeline_mode = #tpu.pipeline_mode<synchronous>, transform_indices = @transform_1, window_bounds = array<i64: 32, 32>}, {pipeline_mode = #tpu.pipeline_mode<synchronous>, transform_indices = @transform_2, window_bounds = array<i64: 1, 32>}, {pipeline_mode = #tpu.pipeline_mode<synchronous>, transform_indices = @transform_3, window_bounds = array<i64: 1, 32>}, {pipeline_mode = #tpu.pipeline_mode<synchronous>, transform_indices = @transform_4, window_bounds = array<i64: 1, 32>}, {pipeline_mode = #tpu.pipeline_mode<synchronous>, transform_indices = @transform_5, window_bounds = array<i64: 32, 32>}, {pipeline_mode = #tpu.pipeline_mode<synchronous>, transform_indices = @transform_6, window_bounds = array<i64: 1, 32>}, {pipeline_mode = #tpu.pipeline_mode<synchronous>, transform_indices = @transform_7, window_bounds = array<i64: 32, 128>}, {pipeline_mode = #tpu.pipeline_mode<synchronous>, transform_indices = @transform_8, window_bounds = array<i64: 1, 128>}, {transform_indices = @transform_9, window_bounds = array<i64: 8, 128>}]} {
    %c0 = arith.constant 0 : index
    %c0_0 = arith.constant 0 : index
    %0 = vector.load %arg1[%c0, %c0_0] : memref<8x32xf32, #tpu.memory_space<vmem>>, vector<8x32xf32>
    %c0_1 = arith.constant 0 : index
    %c0_2 = arith.constant 0 : index
    %1 = vector.load %arg2[%c0_1, %c0_2] : memref<32x32xf32, #tpu.memory_space<vmem>>, vector<32x32xf32>
    %cst = arith.constant dense<0.000000e+00> : vector<8x32xf32>
    %2 = tpu.matmul %0, %1, %cst {dimension_numbers = #tpu.dot_dimension_numbers<[1], [0], [0], [1], [0, 0, 1, 1], [], []>} : vector<8x32xf32>, vector<32x32xf32>, vector<8x32xf32> -> vector<8x32xf32>
    %c0_3 = arith.constant 0 : index
    %c0_4 = arith.constant 0 : index
    %3 = vector.load %arg3[%c0_3, %c0_4] : memref<1x32xf32, #tpu.memory_space<vmem>>, vector<1x32xf32>
    %4 = vector.broadcast %3 : vector<1x32xf32> to vector<8x32xf32>
    %5 = arith.addf %2, %4 : vector<8x32xf32>
    %cst_5 = arith.constant dense<0.000000e+00> : vector<8xf32>
    %6 = vector.multi_reduction <add>, %5, %cst_5 [1] : vector<8x32xf32> to vector<8xf32>
    %7 = vector.shape_cast %6 : vector<8xf32> to vector<8x1xf32>
    %cst_6 = arith.constant 3.200000e+01 : f32
    %8 = vector.broadcast %cst_6 : f32 to vector<8x1xf32>
    %9 = arith.divf %7, %8 : vector<8x1xf32>
    %10 = arith.mulf %5, %5 : vector<8x32xf32>
    %cst_7 = arith.constant dense<0.000000e+00> : vector<8xf32>
    %11 = vector.multi_reduction <add>, %10, %cst_7 [1] : vector<8x32xf32> to vector<8xf32>
    %12 = vector.shape_cast %11 : vector<8xf32> to vector<8x1xf32>
    %cst_8 = arith.constant 3.200000e+01 : f32
    %13 = vector.broadcast %cst_8 : f32 to vector<8x1xf32>
    %14 = arith.divf %12, %13 : vector<8x1xf32>
    %15 = arith.mulf %9, %9 : vector<8x1xf32>
    %16 = arith.subf %14, %15 : vector<8x1xf32>
    %cst_9 = arith.constant 0.000000e+00 : f32
    %17 = vector.broadcast %cst_9 : f32 to vector<8x1xf32>
    %18 = arith.maximumf %16, %17 : vector<8x1xf32>
    %cst_10 = arith.constant 9.99999974E-6 : f32
    %19 = vector.broadcast %cst_10 : f32 to vector<8x1xf32>
    %20 = arith.addf %18, %19 : vector<8x1xf32>
    %21 = math.rsqrt %20 : vector<8x1xf32>
    %22 = vector.broadcast %9 : vector<8x1xf32> to vector<8x32xf32>
    %23 = arith.subf %5, %22 : vector<8x32xf32>
    %24 = vector.broadcast %21 : vector<8x1xf32> to vector<8x32xf32>
    %25 = arith.mulf %23, %24 : vector<8x32xf32>
    %c0_11 = arith.constant 0 : index
    %c0_12 = arith.constant 0 : index
    %26 = vector.load %arg4[%c0_11, %c0_12] : memref<1x32xf32, #tpu.memory_space<vmem>>, vector<1x32xf32>
    %27 = vector.broadcast %26 : vector<1x32xf32> to vector<8x32xf32>
    %28 = arith.mulf %25, %27 : vector<8x32xf32>
    %c0_13 = arith.constant 0 : index
    %c0_14 = arith.constant 0 : index
    %29 = vector.load %arg5[%c0_13, %c0_14] : memref<1x32xf32, #tpu.memory_space<vmem>>, vector<1x32xf32>
    %30 = vector.broadcast %29 : vector<1x32xf32> to vector<8x32xf32>
    %31 = arith.addf %28, %30 : vector<8x32xf32>
    %32 = math.tanh %31 : vector<8x32xf32>
    %c0_15 = arith.constant 0 : index
    %c0_16 = arith.constant 0 : index
    %33 = vector.load %arg6[%c0_15, %c0_16] : memref<32x32xf32, #tpu.memory_space<vmem>>, vector<32x32xf32>
    %cst_17 = arith.constant dense<0.000000e+00> : vector<8x32xf32>
    %34 = tpu.matmul %32, %33, %cst_17 {dimension_numbers = #tpu.dot_dimension_numbers<[1], [0], [0], [1], [0, 0, 1, 1], [], []>} : vector<8x32xf32>, vector<32x32xf32>, vector<8x32xf32> -> vector<8x32xf32>
    %c0_18 = arith.constant 0 : index
    %c0_19 = arith.constant 0 : index
    %35 = vector.load %arg7[%c0_18, %c0_19] : memref<1x32xf32, #tpu.memory_space<vmem>>, vector<1x32xf32>
    %36 = vector.broadcast %35 : vector<1x32xf32> to vector<8x32xf32>
    %37 = arith.addf %34, %36 : vector<8x32xf32>
    %cst_20 = arith.constant 0.000000e+00 : f32
    %38 = vector.broadcast %cst_20 : f32 to vector<8x32xf32>
    %39 = arith.maximumf %37, %38 : vector<8x32xf32>
    %c0_21 = arith.constant 0 : index
    %c0_22 = arith.constant 0 : index
    %40 = vector.load %arg8[%c0_21, %c0_22] : memref<32x128xf32, #tpu.memory_space<vmem>>, vector<32x128xf32>
    %cst_23 = arith.constant dense<0.000000e+00> : vector<8x128xf32>
    %41 = tpu.matmul %39, %40, %cst_23 {dimension_numbers = #tpu.dot_dimension_numbers<[1], [0], [0], [1], [0, 0, 1, 1], [], []>} : vector<8x32xf32>, vector<32x128xf32>, vector<8x128xf32> -> vector<8x128xf32>
    %c0_24 = arith.constant 0 : index
    %c0_25 = arith.constant 0 : index
    %42 = vector.load %arg9[%c0_24, %c0_25] : memref<1x128xf32, #tpu.memory_space<vmem>>, vector<1x128xf32>
    %43 = vector.broadcast %42 : vector<1x128xf32> to vector<8x128xf32>
    %44 = arith.addf %41, %43 : vector<8x128xf32>
    %45 = tpu.iota {dimensions = array<i32: 1>} : vector<8x128xi32>
    %46 = math.tanh %44 : vector<8x128xf32>
    %cst_26 = arith.constant 1.000000e+00 : f32
    %47 = vector.broadcast %cst_26 : f32 to vector<8x128xf32>
    %48 = arith.addf %46, %47 : vector<8x128xf32>
    %cst_27 = arith.constant 6.000000e+00 : f32
    %49 = vector.broadcast %cst_27 : f32 to vector<8x128xf32>
    %50 = arith.mulf %49, %48 : vector<8x128xf32>
    %cst_28 = arith.constant -1.000000e+01 : f32
    %51 = vector.broadcast %cst_28 : f32 to vector<8x128xf32>
    %52 = arith.addf %51, %50 : vector<8x128xf32>
    %53 = math.exp %52 : vector<8x128xf32>
    %c64_i32 = arith.constant 64 : i32
    %54 = vector.broadcast %c64_i32 : i32 to vector<8x128xi32>
    %55 = arith.cmpi sge, %45, %54 : vector<8x128xi32>
    %56 = arith.select %55, %53, %44 : vector<8x128xi1>, vector<8x128xf32>
    %c0_29 = arith.constant 0 : index
    %c0_30 = arith.constant 0 : index
    %57 = vector.load %arg10[%c0_29, %c0_30] : memref<8x128xf32, #tpu.memory_space<vmem>>, vector<8x128xf32>
    tpu.vector_store %arg10[%c0_29, %c0_30], %56 {strides = array<i32>} : memref<8x128xf32, #tpu.memory_space<vmem>>, vector<8x128xf32>,
    return
  }
  func.func @transform_0(%arg0: i32) -> (i32, i32) {
    %c0_i32 = arith.constant 0 : i32
    %c0_i32_0 = arith.constant 0 : i32
    return %arg0, %c0_i32 : i32, i32
  }
  func.func @transform_1(%arg0: i32) -> (i32, i32) {
    %c0_i32 = arith.constant 0 : i32
    %c0_i32_0 = arith.constant 0 : i32
    %c0_i32_1 = arith.constant 0 : i32
    return %c0_i32, %c0_i32_0 : i32, i32
  }
  func.func @transform_2(%arg0: i32) -> (i32, i32) {
    %c0_i32 = arith.constant 0 : i32
    %c0_i32_0 = arith.constant 0 : i32
    %c0_i32_1 = arith.constant 0 : i32
    return %c0_i32, %c0_i32_0 : i32, i32
  }
  func.func @transform_3(%arg0: i32) -> (i32, i32) {
    %c0_i32 = arith.constant 0 : i32
    %c0_i32_0 = arith.constant 0 : i32
    %c0_i32_1 = arith.constant 0 : i32
    return %c0_i32, %c0_i32_0 : i32, i32
  }
  func.func @transform_4(%arg0: i32) -> (i32, i32) {
    %c0_i32 = arith.constant 0 : i32
    %c0_i32_0 = arith.constant 0 : i32
    %c0_i32_1 = arith.constant 0 : i32
    return %c0_i32, %c0_i32_0 : i32, i32
  }
  func.func @transform_5(%arg0: i32) -> (i32, i32) {
    %c0_i32 = arith.constant 0 : i32
    %c0_i32_0 = arith.constant 0 : i32
    %c0_i32_1 = arith.constant 0 : i32
    return %c0_i32, %c0_i32_0 : i32, i32
  }
  func.func @transform_6(%arg0: i32) -> (i32, i32) {
    %c0_i32 = arith.constant 0 : i32
    %c0_i32_0 = arith.constant 0 : i32
    %c0_i32_1 = arith.constant 0 : i32
    return %c0_i32, %c0_i32_0 : i32, i32
  }
  func.func @transform_7(%arg0: i32) -> (i32, i32) {
    %c0_i32 = arith.constant 0 : i32
    %c0_i32_0 = arith.constant 0 : i32
    %c0_i32_1 = arith.constant 0 : i32
    return %c0_i32, %c0_i32_0 : i32, i32
  }
  func.func @transform_8(%arg0: i32) -> (i32, i32) {
    %c0_i32 = arith.constant 0 : i32
    %c0_i32_0 = arith.constant 0 : i32
    %c0_i32_1 = arith.constant 0 : i32
    return %c0_i32, %c0_i32_0 : i32, i32
  }
  func.func @transform_9(%arg0: i32) -> (i32, i32) {
    %c0_i32 = arith.constant 0 : i32
    %c0_i32_0 = arith.constant 0 : i32
    return %arg0, %c0_i32 : i32, i32
  }
}

module attributes {stable_mosaic.version = 11 : i64} {
  func.func @_actor_kernel(%arg0: i32, %arg1: memref<8x32xf32, #tpu.memory_space<vmem>>, %arg2: memref<32x32xf32, #tpu.memory_space<vmem>>, %arg3: memref<1x32xf32, #tpu.memory_space<vmem>>, %arg4: memref<1x32xf32, #tpu.memory_space<vmem>>, %arg5: memref<1x32xf32, #tpu.memory_space<vmem>>, %arg6: memref<32x32xf32, #tpu.memory_space<vmem>>, %arg7: memref<1x32xf32, #tpu.memory_space<vmem>>, %arg8: memref<32x128xf32, #tpu.memory_space<vmem>>, %arg9: memref<1x128xf32, #tpu.memory_space<vmem>>, %arg10: memref<8x128xf32, #tpu.memory_space<vmem>>) attributes {dimension_semantics = [#tpu.dimension_semantics<parallel>], iteration_bounds = array<i64: 1>, scalar_prefetch = 0 : i64, scratch_operands = 0 : i64, tpu.core_type = #tpu.core_type<tc>, window_params = [{transform_indices = @transform_0, window_bounds = array<i64: 8, 32>}, {pipeline_mode = #tpu.pipeline_mode<synchronous>, transform_indices = @transform_1, window_bounds = array<i64: 32, 32>}, {pipeline_mode = #tpu.pipeline_mode<synchronous>, transform_indices = @transform_2, window_bounds = array<i64: 1, 32>}, {pipeline_mode = #tpu.pipeline_mode<synchronous>, transform_indices = @transform_3, window_bounds = array<i64: 1, 32>}, {pipeline_mode = #tpu.pipeline_mode<synchronous>, transform_indices = @transform_4, window_bounds = array<i64: 1, 32>}, {pipeline_mode = #tpu.pipeline_mode<synchronous>, transform_indices = @transform_5, window_bounds = array<i64: 32, 32>}, {pipeline_mode = #tpu.pipeline_mode<synchronous>, transform_indices = @transform_6, window_bounds = array<i64: 1, 32>}, {pipeline_mode = #tpu.pipeline_mode<synchronous>, transform_indices = @transform_7, window_bounds = array<i64: 32, 128>}, {pipeline_mode = #tpu.pipeline_mode<synchronous>, transform_indices = @transform_8, window_bounds = array<i64: 1, 128>}, {transform_indices = @transform_9, window_bounds = array<i64: 8, 128>}]} {
    %c0 = arith.constant 0 : index
    %c0_0 = arith.constant 0 : index
    %0 = vector.load %arg1[%c0, %c0_0] : memref<8x32xf32, #tpu.memory_space<vmem>>, vector<8x32xf32>
    %c0_1 = arith.constant 0 : index
    %c0_2 = arith.constant 0 : index
    %1 = vector.load %arg2[%c0_1, %c0_2] : memref<32x32xf32, #tpu.memory_space<vmem>>, vector<32x32xf32>
    %cst = arith.constant dense<0.000000e+00> : vector<8x32xf32>
    %2 = tpu.matmul %0, %1, %cst {dimension_numbers = #tpu.dot_dimension_numbers<[1], [0], [0], [1], [0, 0, 1, 1], [], []>} : vector<8x32xf32>, vector<32x32xf32>, vector<8x32xf32> -> vector<8x32xf32>
    %c0_3 = arith.constant 0 : index
    %c0_4 = arith.constant 0 : index
    %3 = vector.load %arg3[%c0_3, %c0_4] : memref<1x32xf32, #tpu.memory_space<vmem>>, vector<1x32xf32>
    %4 = vector.broadcast %3 : vector<1x32xf32> to vector<8x32xf32>
    %5 = arith.addf %2, %4 : vector<8x32xf32>
    %cst_5 = arith.constant dense<0.000000e+00> : vector<8xf32>
    %6 = vector.multi_reduction <add>, %5, %cst_5 [1] : vector<8x32xf32> to vector<8xf32>
    %7 = vector.shape_cast %6 : vector<8xf32> to vector<8x1xf32>
    %cst_6 = arith.constant 3.200000e+01 : f32
    %8 = vector.broadcast %cst_6 : f32 to vector<8x1xf32>
    %9 = arith.divf %7, %8 : vector<8x1xf32>
    %10 = arith.mulf %5, %5 : vector<8x32xf32>
    %cst_7 = arith.constant dense<0.000000e+00> : vector<8xf32>
    %11 = vector.multi_reduction <add>, %10, %cst_7 [1] : vector<8x32xf32> to vector<8xf32>
    %12 = vector.shape_cast %11 : vector<8xf32> to vector<8x1xf32>
    %cst_8 = arith.constant 3.200000e+01 : f32
    %13 = vector.broadcast %cst_8 : f32 to vector<8x1xf32>
    %14 = arith.divf %12, %13 : vector<8x1xf32>
    %15 = arith.mulf %9, %9 : vector<8x1xf32>
    %16 = arith.subf %14, %15 : vector<8x1xf32>
    %cst_9 = arith.constant 0.000000e+00 : f32
    %17 = vector.broadcast %cst_9 : f32 to vector<8x1xf32>
    %18 = arith.maximumf %16, %17 : vector<8x1xf32>
    %cst_10 = arith.constant 9.99999974E-6 : f32
    %19 = vector.broadcast %cst_10 : f32 to vector<8x1xf32>
    %20 = arith.addf %18, %19 : vector<8x1xf32>
    %21 = math.rsqrt %20 : vector<8x1xf32>
    %22 = vector.broadcast %9 : vector<8x1xf32> to vector<8x32xf32>
    %23 = arith.subf %5, %22 : vector<8x32xf32>
    %24 = vector.broadcast %21 : vector<8x1xf32> to vector<8x32xf32>
    %25 = arith.mulf %23, %24 : vector<8x32xf32>
    %c0_11 = arith.constant 0 : index
    %c0_12 = arith.constant 0 : index
    %26 = vector.load %arg4[%c0_11, %c0_12] : memref<1x32xf32, #tpu.memory_space<vmem>>, vector<1x32xf32>
    %27 = vector.broadcast %26 : vector<1x32xf32> to vector<8x32xf32>
    %28 = arith.mulf %25, %27 : vector<8x32xf32>
    %c0_13 = arith.constant 0 : index
    %c0_14 = arith.constant 0 : index
    %29 = vector.load %arg5[%c0_13, %c0_14] : memref<1x32xf32, #tpu.memory_space<vmem>>, vector<1x32xf32>
    %30 = vector.broadcast %29 : vector<1x32xf32> to vector<8x32xf32>
    %31 = arith.addf %28, %30 : vector<8x32xf32>
    %32 = math.tanh %31 : vector<8x32xf32>
    %c0_15 = arith.constant 0 : index
    %c0_16 = arith.constant 0 : index
    %33 = vector.load %arg6[%c0_15, %c0_16] : memref<32x32xf32, #tpu.memory_space<vmem>>, vector<32x32xf32>
    %cst_17 = arith.constant dense<0.000000e+00> : vector<8x32xf32>
    %34 = tpu.matmul %32, %33, %cst_17 {dimension_numbers = #tpu.dot_dimension_numbers<[1], [0], [0], [1], [0, 0, 1, 1], [], []>} : vector<8x32xf32>, vector<32x32xf32>, vector<8x32xf32> -> vector<8x32xf32>
    %c0_18 = arith.constant 0 : index
    %c0_19 = arith.constant 0 : index
    %35 = vector.load %arg7[%c0_18, %c0_19] : memref<1x32xf32, #tpu.memory_space<vmem>>, vector<1x32xf32>
    %36 = vector.broadcast %35 : vector<1x32xf32> to vector<8x32xf32>
    %37 = arith.addf %34, %36 : vector<8x32xf32>
    %cst_20 = arith.constant 0.000000e+00 : f32
    %38 = vector.broadcast %cst_20 : f32 to vector<8x32xf32>
    %39 = arith.maximumf %37, %38 : vector<8x32xf32>
    %c0_21 = arith.constant 0 : index
    %c0_22 = arith.constant 0 : index
    %40 = vector.load %arg8[%c0_21, %c0_22] : memref<32x128xf32, #tpu.memory_space<vmem>>, vector<32x128xf32>
    %cst_23 = arith.constant dense<0.000000e+00> : vector<8x128xf32>
    %41 = tpu.matmul %39, %40, %cst_23 {dimension_numbers = #tpu.dot_dimension_numbers<[1], [0], [0], [1], [0, 0, 1, 1], [], []>} : vector<8x32xf32>, vector<32x128xf32>, vector<8x128xf32> -> vector<8x128xf32>
    %c0_24 = arith.constant 0 : index
    %c0_25 = arith.constant 0 : index
    %42 = vector.load %arg9[%c0_24, %c0_25] : memref<1x128xf32, #tpu.memory_space<vmem>>, vector<1x128xf32>
    %43 = vector.broadcast %42 : vector<1x128xf32> to vector<8x128xf32>
    %44 = arith.addf %41, %43 : vector<8x128xf32>
    %45 = tpu.iota {dimensions = array<i32: 1>} : vector<8x128xi32>
    %46 = math.tanh %44 : vector<8x128xf32>
    %cst_26 = arith.constant 1.000000e+00 : f32
    %47 = vector.broadcast %cst_26 : f32 to vector<8x128xf32>
    %48 = arith.addf %46, %47 : vector<8x128xf32>
    %cst_27 = arith.constant 6.000000e+00 : f32
    %49 = vector.broadcast %cst_27 : f32 to vector<8x128xf32>
    %50 = arith.mulf %49, %48 : vector<8x128xf32>
    %cst_28 = arith.constant -1.000000e+01 : f32
    %51 = vector.broadcast %cst_28 : f32 to vector<8x128xf32>
    %52 = arith.addf %51, %50 : vector<8x128xf32>
    %53 = math.exp %52 : vector<8x128xf32>
    %c64_i32 = arith.constant 64 : i32
    %54 = vector.broadcast %c64_i32 : i32 to vector<8x128xi32>
    %55 = arith.cmpi sge, %45, %54 : vector<8x128xi32>
    %56 = arith.select %55, %53, %44 : vector<8x128xi1>, vector<8x128xf32>
    %c0_29 = arith.constant 0 : index
    %c0_30 = arith.constant 0 : index
    %57 = vector.load %arg10[%c0_29, %c0_30] : memref<8x128xf32, #tpu.memory_space<vmem>>, vector<8x128xf32>
    tpu.vector_store %arg10[%c0_29, %c0_30], %56 {strides = array<i32>} : memref<8x128xf32, #tpu.memory_space<vmem>>, vector<8x128xf32>,
    return
  }
  func.func @transform_0(%arg0: i32) -> (i32, i32) {
    %c0_i32 = arith.constant 0 : i32
    %c0_i32_0 = arith.constant 0 : i32
    return %arg0, %c0_i32 : i32, i32
  }
  func.func @transform_1(%arg0: i32) -> (i32, i32) {
    %c0_i32 = arith.constant 0 : i32
    %c0_i32_0 = arith.constant 0 : i32
    %c0_i32_1 = arith.constant 0 : i32
    return %c0_i32, %c0_i32_0 : i32, i32
  }
  func.func @transform_2(%arg0: i32) -> (i32, i32) {
    %c0_i32 = arith.constant 0 : i32
    %c0_i32_0 = arith.constant 0 : i32
    %c0_i32_1 = arith.constant 0 : i32
    return %c0_i32, %c0_i32_0 : i32, i32
  }
  func.func @transform_3(%arg0: i32) -> (i32, i32) {
    %c0_i32 = arith.constant 0 : i32
    %c0_i32_0 = arith.constant 0 : i32
    %c0_i32_1 = arith.constant 0 : i32
    return %c0_i32, %c0_i32_0 : i32, i32
  }
  func.func @transform_4(%arg0: i32) -> (i32, i32) {
    %c0_i32 = arith.constant 0 : i32
    %c0_i32_0 = arith.constant 0 : i32
    %c0_i32_1 = arith.constant 0 : i32
    return %c0_i32, %c0_i32_0 : i32, i32
  }
  func.func @transform_5(%arg0: i32) -> (i32, i32) {
    %c0_i32 = arith.constant 0 : i32
    %c0_i32_0 = arith.constant 0 : i32
    %c0_i32_1 = arith.constant 0 : i32
    return %c0_i32, %c0_i32_0 : i32, i32
  }
  func.func @transform_6(%arg0: i32) -> (i32, i32) {
    %c0_i32 = arith.constant 0 : i32
    %c0_i32_0 = arith.constant 0 : i32
    %c0_i32_1 = arith.constant 0 : i32
    return %c0_i32, %c0_i32_0 : i32, i32
  }
  func.func @transform_7(%arg0: i32) -> (i32, i32) {
    %c0_i32 = arith.constant 0 : i32
    %c0_i32_0 = arith.constant 0 : i32
    %c0_i32_1 = arith.constant 0 : i32
    return %c0_i32, %c0_i32_0 : i32, i32
  }
  func.func @transform_8(%arg0: i32) -> (i32, i32) {
    %c0_i32 = arith.constant 0 : i32
    %c0_i32_0 = arith.constant 0 : i32
    %c0_i32_1 = arith.constant 0 : i32
    return %c0_i32, %c0_i32_0 : i32, i32
  }
  func.func @transform_9(%arg0: i32) -> (i32, i32) {
    %c0_i32 = arith.constant 0 : i32
    %c0_i32_0 = arith.constant 0 : i32
    return %arg0, %c0_i32 : i32, i32
  }
}

</mosaic_0001>

<llo_original>
// kernel: tpu_custom_call.1
$region0: #{tpu_custom_call.1}
  #allocation0 [shape = 'u32[]', space=smem, size = 0x4, offset = 0x4, fixed_abs, tag = 'smem constant byte address 0x4 - core index']
  #allocation1 [shape = 'u32[144,128]{1,0:T(1,128)}', space=vmem, size = 0x12000, scoped, tag = 'internal scratch']
  %s0 = inlined_call_operand.hbm [shape: f32[8,32], index: 0, kind: input, shape index: {}]
  %s1 = inlined_call_operand.hbm [shape: f32[32,32], index: 1, kind: input, shape index: {}]
  %s2 = inlined_call_operand.vmem [shape: f32[1,32], index: 2, kind: input, shape index: {}]
  %s3 = inlined_call_operand.vmem [shape: f32[1,32], index: 3, kind: input, shape index: {}]
  %s4 = inlined_call_operand.vmem [shape: f32[1,32], index: 4, kind: input, shape index: {}]
  %s5 = inlined_call_operand.hbm [shape: f32[32,32], index: 5, kind: input, shape index: {}]
  %s6 = inlined_call_operand.vmem [shape: f32[1,32], index: 6, kind: input, shape index: {}]
  %s7 = inlined_call_operand.hbm [shape: f32[32,128], index: 7, kind: input, shape index: {}]
  %s8 = inlined_call_operand.vmem [shape: f32[1,128], index: 8, kind: input, shape index: {}]
  %s9 = inlined_call_operand.hbm [shape: f32[8,128], index: 9, kind: output, shape index: {}]
  %s10 = sld [smem:[#allocation0]]
  $region62: #{tpu_custom_call.1} parent=0
    _
  %s12 = ssub.s32 1, %s10
  %s13 = scalar_select 0, %s12, %s10
  $region1: #{tpu_custom_call.1} parent=0
    #allocation2 [shape = 'u8[4096]{0}', space=vmem, size = 0x1000, scoped, tag = 'input window, operand 0, single buffered']
    #allocation3 [shape = 's32[1]{0}', space=sflag, size = 0x4, scoped, tag = 'scoped memory for tpu_custom_call.1']
    #allocation4 [shape = 's32[1]{0}', space=sflag, size = 0x4, scoped, tag = 'scoped memory for tpu_custom_call.1']
    #allocation5 [shape = 'u8[16384]{0}', space=vmem, size = 0x4000, scoped, tag = 'input window, operand 1, single buffered']
    #allocation6 [shape = 's32[1]{0}', space=sflag, size = 0x4, scoped, tag = 'scoped memory for tpu_custom_call.1']
    #allocation7 [shape = 'u8[16384]{0}', space=vmem, size = 0x4000, scoped, tag = 'input window, operand 5, single buffered']
    #allocation8 [shape = 'u8[16384]{0}', space=vmem, size = 0x4000, scoped, tag = 'input window, operand 7, single buffered']
    #allocation9 [shape = 's32[1]{0}', space=sflag, size = 0x4, scoped, tag = 'scoped memory for tpu_custom_call.1']
    #allocation10 [shape = 'u8[4096]{0}', space=vmem, size = 0x1000, scoped, tag = 'output window, operand 0, single buffered']
    %14 = vsyncpa [#allocation3], 0
    %15 = vsyncpa [#allocation6], 0
    %16 = vsyncpa [#allocation9], 0
    %17 = vsyncpa [#allocation4], 0
    // Predicated region
    $region2: #{tpu_custom_call.1} parent=1 // pred_check
      _
    $region3: #{tpu_custom_call.1} parent=1 // pred_check_branch
      %19 = sbr.rel (0) target = $region5
    $region4: #{tpu_custom_call.1} parent=1 // pred_region
      %s21 = ssub.s32 128, 128
      %22 = vsyncadd [#allocation3], %s21
      %s24 = sshll.u32 [#allocation2], 4
      %s25 = int_to_ptr.vmem [resolvable:$true] %s24
      %27 = dma.hbm_to_vmem [thread:$0]  %s0, 128, %s25, [#allocation3]
    $region5: #{tpu_custom_call.1} parent=1 // pred_fallthru
      _
    // Predicated region
    $region6: #{tpu_custom_call.1} parent=1 // pred_check
      _
    $region7: #{tpu_custom_call.1} parent=1 // pred_check_branch
      %29 = sbr.rel (0) target = $region9
    $region8: #{tpu_custom_call.1} parent=1 // pred_region
      %s31 = ssub.s32 512, 512
      %32 = vsyncadd [#allocation6], %s31
      %s33 = sshll.u32 [#allocation5], 4
      %s34 = int_to_ptr.vmem [resolvable:$true] %s33
      %39 = dma.hbm_to_vmem [thread:$0]  %s1, 512, %s34, [#allocation6], 128, 128, 8
    $region9: #{tpu_custom_call.1} parent=1 // pred_fallthru
      _
    // Predicated region
    $region10: #{tpu_custom_call.1} parent=1 // pred_check
      _
    $region11: #{tpu_custom_call.1} parent=1 // pred_check_branch
      %41 = sbr.rel (0) target = $region13
    $region12: #{tpu_custom_call.1} parent=1 // pred_region
      _
    $region13: #{tpu_custom_call.1} parent=1 // pred_fallthru
      _
    // Predicated region
    $region14: #{tpu_custom_call.1} parent=1 // pred_check
      _
    $region15: #{tpu_custom_call.1} parent=1 // pred_check_branch
      %43 = sbr.rel (0) target = $region17
    $region16: #{tpu_custom_call.1} parent=1 // pred_region
      _
    $region17: #{tpu_custom_call.1} parent=1 // pred_fallthru
      _
    // Predicated region
    $region18: #{tpu_custom_call.1} parent=1 // pred_check
      _
    $region19: #{tpu_custom_call.1} parent=1 // pred_check_branch
      %45 = sbr.rel (0) target = $region21
    $region20: #{tpu_custom_call.1} parent=1 // pred_region
      _
    $region21: #{tpu_custom_call.1} parent=1 // pred_fallthru
      _
    // Predicated region
    $region22: #{tpu_custom_call.1} parent=1 // pred_check
      _
    $region23: #{tpu_custom_call.1} parent=1 // pred_check_branch
      %47 = sbr.rel (0) target = $region25
    $region24: #{tpu_custom_call.1} parent=1 // pred_region
      %s49 = ssub.s32 512, 512
      %50 = vsyncadd [#allocation6], %s49
      %s51 = sshll.u32 [#allocation7], 4
      %s52 = int_to_ptr.vmem [resolvable:$true] %s51
      %57 = dma.hbm_to_vmem [thread:$0]  %s5, 512, %s52, [#allocation6], 128, 128, 8
    $region25: #{tpu_custom_call.1} parent=1 // pred_fallthru
      _
    // Predicated region
    $region26: #{tpu_custom_call.1} parent=1 // pred_check
      _
    $region27: #{tpu_custom_call.1} parent=1 // pred_check_branch
      %59 = sbr.rel (0) target = $region29
    $region28: #{tpu_custom_call.1} parent=1 // pred_region
      _
    $region29: #{tpu_custom_call.1} parent=1 // pred_fallthru
      _
    // Predicated region
    $region30: #{tpu_custom_call.1} parent=1 // pred_check
      _
    $region31: #{tpu_custom_call.1} parent=1 // pred_check_branch
      %61 = sbr.rel (0) target = $region33
    $region32: #{tpu_custom_call.1} parent=1 // pred_region
      %s63 = ssub.s32 512, 512
      %64 = vsyncadd [#allocation9], %s63
      %s65 = sshll.u32 [#allocation8], 4
      %s66 = int_to_ptr.vmem [resolvable:$true] %s65
      %71 = dma.hbm_to_vmem [thread:$0]  %s7, 512, %s66, [#allocation9], 128, 128, 8
    $region33: #{tpu_custom_call.1} parent=1 // pred_fallthru
      _
    // Predicated region
    $region34: #{tpu_custom_call.1} parent=1 // pred_check
      _
    $region35: #{tpu_custom_call.1} parent=1 // pred_check_branch
      %73 = sbr.rel (0) target = $region37
    $region36: #{tpu_custom_call.1} parent=1 // pred_region
      _
    $region37: #{tpu_custom_call.1} parent=1 // pred_fallthru
      _
    // Predicated region
    $region38: #{tpu_custom_call.1} parent=1 // pred_check
      _
    $region39: #{tpu_custom_call.1} parent=1 // pred_check_branch
      %75 = sbr.rel (0) target = $region41
    $region40: #{tpu_custom_call.1} parent=1 // pred_region
      %76 = dma.done [#allocation3], 128
    $region41: #{tpu_custom_call.1} parent=1 // pred_fallthru
      _
    // Predicated region
    $region42: #{tpu_custom_call.1} parent=1 // pred_check
      _
    $region43: #{tpu_custom_call.1} parent=1 // pred_check_branch
      %78 = sbr.rel (0) target = $region45
    $region44: #{tpu_custom_call.1} parent=1 // pred_region
      %79 = dma.done [#allocation6], 512
    $region45: #{tpu_custom_call.1} parent=1 // pred_fallthru
      _
    // Predicated region
    $region46: #{tpu_custom_call.1} parent=1 // pred_check
      _
    $region47: #{tpu_custom_call.1} parent=1 // pred_check_branch
      %81 = sbr.rel (0) target = $region49
    $region48: #{tpu_custom_call.1} parent=1 // pred_region
      %82 = dma.done [#allocation6], 512
    $region49: #{tpu_custom_call.1} parent=1 // pred_fallthru
      _
    // Predicated region
    $region50: #{tpu_custom_call.1} parent=1 // pred_check
      _
    $region51: #{tpu_custom_call.1} parent=1 // pred_check_branch
      %84 = sbr.rel (0) target = $region53
    $region52: #{tpu_custom_call.1} parent=1 // pred_region
      %85 = dma.done [#allocation9], 512
    $region53: #{tpu_custom_call.1} parent=1 // pred_fallthru
      _
    %v86 = vld [vmem:[#allocation2] sm:$0xff]
    %v87 = vld [vmem:[#allocation5] sm:$0xff]
    %v88 = vld [vmem:[#allocation5 + $0x8] sm:$0xff]
    %v89 = vld [vmem:[#allocation5 + $0x10] sm:$0xff]
    %v90 = vld [vmem:[#allocation5 + $0x18] sm:$0xff]
    %v91 = vld [vmem:[%s2] sm:$0x1]
    %v93 = vlaneseq
    %v94 = vshrl.u32 %v93, 7
    %v95 = vsub.s32 0, %v94
    %v96 = vrot.slane %v91, %v95
    %vm98 = vcmask 261120
    %v100 = vsel %vm98, %v86, 0
    %102 = vmatprep.subr.mxu0 0.0
    %103 = vmatpush1.msra.mxu0 0.0
    %104 = vmatprep.subr.mxu0 0.0
    %105 = vmatpush1.msra.mxu0 0.0
    %106 = vmatprep.subr.mxu0 0.0
    %107 = vmatpush1.msra.mxu0 0.0
    %108 = vmatprep.subr.mxu0 0.0
    %109 = vmatpush1.msra.mxu0 0.0
    %110 = vmatprep.subr.mxu0 0.0
    %111 = vmatpush1.msra.mxu0 0.0
    %112 = vmatprep.subr.mxu0 0.0
    %113 = vmatpush1.msra.mxu0 0.0
    %114 = vmatprep.subr.mxu0 0.0
    %115 = vmatpush1.msra.mxu0 0.0
    %116 = vmatprep.subr.mxu0 0.0
    %117 = vmatpush1.msra.mxu0 0.0
    %118 = vmatprep.subr.mxu0 0.0
    %119 = vmatpush1.msra.mxu0 0.0
    %120 = vmatprep.subr.mxu0 0.0
    %121 = vmatpush1.msra.mxu0 0.0
    %122 = vmatprep.subr.mxu0 0.0
    %123 = vmatpush1.msra.mxu0 0.0
    %124 = vmatprep.subr.mxu0 0.0
    %125 = vmatpush1.msra.mxu0 0.0
    %126 = vmatprep.subr.mxu0 0.0
    %127 = vmatpush1.msra.mxu0 %v90
    %128 = vmatprep.subr.mxu0 0.0
    %129 = vmatpush1.msra.mxu0 %v89
    %130 = vmatprep.subr.mxu0 0.0
    %131 = vmatpush1.msra.mxu0 %v88
    %132 = vmatprep.subr.mxu0 0.0
    %133 = vmatpush1.msra.mxu0 %v87
    %134 = vmatprep.subr.mxu0 0.0
    %135 = vmatpush2.msra.mxu0 0.0
    %136 = vmatprep.subr.mxu0 0.0
    %137 = vmatpush2.msra.mxu0 0.0
    %138 = vmatprep.subr.mxu0 0.0
    %139 = vmatpush2.msra.mxu0 0.0
    %140 = vmatprep.subr.mxu0 0.0
    %141 = vmatpush2.msra.mxu0 0.0
    %142 = vmatprep.subr.mxu0 0.0
    %143 = vmatpush2.msra.mxu0 0.0
    %144 = vmatprep.subr.mxu0 0.0
    %145 = vmatpush2.msra.mxu0 0.0
    %146 = vmatprep.subr.mxu0 0.0
    %147 = vmatpush2.msra.mxu0 0.0
    %148 = vmatprep.subr.mxu0 0.0
    %149 = vmatpush2.msra.mxu0 0.0
    %150 = vmatprep.subr.mxu0 0.0
    %151 = vmatpush2.msra.mxu0 0.0
    %152 = vmatprep.subr.mxu0 0.0
    %153 = vmatpush2.msra.mxu0 0.0
    %154 = vmatprep.subr.mxu0 0.0
    %155 = vmatpush2.msra.mxu0 0.0
    %156 = vmatprep.subr.mxu0 0.0
    %157 = vmatpush2.msra.mxu0 0.0
    %158 = vmatprep.subr.mxu0 0.0
    %159 = vmatpush2.msra.mxu0 0.0
    %160 = vmatprep.subr.mxu0 0.0
    %161 = vmatpush2.msra.mxu0 0.0
    %162 = vmatprep.subr.mxu0 0.0
    %163 = vmatpush2.msra.mxu0 0.0
    %164 = vmatprep.subr.mxu0 0.0
    %165 = vmatpush2.msra.mxu0 0.0
    %166 = vmatprep.mubr.f32.mxu0 0.0
    %167 = vmatmul.mubr.f32.gmra.mxu0 %v100
    %v168 = vpop.f32.mrf.mxu0
    %v169 = vadd.f32 %v96, %v168
    %v170 = vpop.f32.mrf.mxu0
    %171 = vdwg.mxu0
    %v172 = vsel %vm98, %v169, 0.0
    %173 = vadd.xlane.f32.xlu0 %v172
    %v174 = vpop.xlane.xlu0 %173
    %v175 = vrcp.pop 32.0
    %v176 = vmul.f32 %v174, %v175
    %v177 = vmul.f32 %v169, %v169
    %v178 = vsel %vm98, %v177, 0.0
    %179 = vadd.xlane.f32.xlu0 %v178
    %v180 = vpop.xlane.xlu0 %179
    %v181 = vmul.f32 %v180, %v175
    %v182 = vmul.f32 %v176, %v176
    %v183 = vsub.f32 %v181, %v182
    %v184 = vmax.f32 %v183, 0.0
    %v185 = vadd.f32 %v184, 1e-05
    %v186 = vrsqrt.pop %v185
    %v187 = vsub.f32 %v169, %v176
    %v188 = vmul.f32 %v187, %v186
    %v189 = vld [vmem:[%s3] sm:$0x1]
    %v191 = vlaneseq
    %v192 = vshrl.u32 %v191, 7
    %v193 = vsub.s32 0, %v192
    %v194 = vrot.slane %v189, %v193
    %v196 = vmul.f32 %v188, %v194
    %v197 = vld [vmem:[%s4] sm:$0x1]
    %v199 = vlaneseq
    %v200 = vshrl.u32 %v199, 7
    %v201 = vsub.s32 0, %v200
    %v202 = vrot.slane %v197, %v201
    %v204 = vadd.f32 %v196, %v202
    %v205 = vtanh.pop %v204
    %v206 = vld [vmem:[#allocation7] sm:$0xff]
    %v207 = vld [vmem:[#allocation7 + $0x8] sm:$0xff]
    %v208 = vld [vmem:[#allocation7 + $0x10] sm:$0xff]
    %v209 = vld [vmem:[#allocation7 + $0x18] sm:$0xff]
    %v210 = vld [vmem:[%s6] sm:$0x1]
    %v212 = vlaneseq
    %v213 = vshrl.u32 %v212, 7
    %v214 = vsub.s32 0, %v213
    %v215 = vrot.slane %v210, %v214
    %v218 = vsel %vm98, %v205, 0
    %220 = vmatprep.subr.mxu0 0.0
    %221 = vmatpush1.msra.mxu0 0.0
    %222 = vmatprep.subr.mxu0 0.0
    %223 = vmatpush1.msra.mxu0 0.0
    %224 = vmatprep.subr.mxu0 0.0
    %225 = vmatpush1.msra.mxu0 0.0
    %226 = vmatprep.subr.mxu0 0.0
    %227 = vmatpush1.msra.mxu0 0.0
    %228 = vmatprep.subr.mxu0 0.0
    %229 = vmatpush1.msra.mxu0 0.0
    %230 = vmatprep.subr.mxu0 0.0
    %231 = vmatpush1.msra.mxu0 0.0
    %232 = vmatprep.subr.mxu0 0.0
    %233 = vmatpush1.msra.mxu0 0.0
    %234 = vmatprep.subr.mxu0 0.0
    %235 = vmatpush1.msra.mxu0 0.0
    %236 = vmatprep.subr.mxu0 0.0
    %237 = vmatpush1.msra.mxu0 0.0
    %238 = vmatprep.subr.mxu0 0.0
    %239 = vmatpush1.msra.mxu0 0.0
    %240 = vmatprep.subr.mxu0 0.0
    %241 = vmatpush1.msra.mxu0 0.0
    %242 = vmatprep.subr.mxu0 0.0
    %243 = vmatpush1.msra.mxu0 0.0
    %244 = vmatprep.subr.mxu0 0.0
    %245 = vmatpush1.msra.mxu0 %v209
    %246 = vmatprep.subr.mxu0 0.0
    %247 = vmatpush1.msra.mxu0 %v208
    %248 = vmatprep.subr.mxu0 0.0
    %249 = vmatpush1.msra.mxu0 %v207
    %250 = vmatprep.subr.mxu0 0.0
    %251 = vmatpush1.msra.mxu0 %v206
    %252 = vmatprep.subr.mxu0 0.0
    %253 = vmatpush2.msra.mxu0 0.0
    %254 = vmatprep.subr.mxu0 0.0
    %255 = vmatpush2.msra.mxu0 0.0
    %256 = vmatprep.subr.mxu0 0.0
    %257 = vmatpush2.msra.mxu0 0.0
    %258 = vmatprep.subr.mxu0 0.0
    %259 = vmatpush2.msra.mxu0 0.0
    %260 = vmatprep.subr.mxu0 0.0
    %261 = vmatpush2.msra.mxu0 0.0
    %262 = vmatprep.subr.mxu0 0.0
    %263 = vmatpush2.msra.mxu0 0.0
    %264 = vmatprep.subr.mxu0 0.0
    %265 = vmatpush2.msra.mxu0 0.0
    %266 = vmatprep.subr.mxu0 0.0
    %267 = vmatpush2.msra.mxu0 0.0
    %268 = vmatprep.subr.mxu0 0.0
    %269 = vmatpush2.msra.mxu0 0.0
    %270 = vmatprep.subr.mxu0 0.0
    %271 = vmatpush2.msra.mxu0 0.0
    %272 = vmatprep.subr.mxu0 0.0
    %273 = vmatpush2.msra.mxu0 0.0
    %274 = vmatprep.subr.mxu0 0.0
    %275 = vmatpush2.msra.mxu0 0.0
    %276 = vmatprep.subr.mxu0 0.0
    %277 = vmatpush2.msra.mxu0 0.0
    %278 = vmatprep.subr.mxu0 0.0
    %279 = vmatpush2.msra.mxu0 0.0
    %280 = vmatprep.subr.mxu0 0.0
    %281 = vmatpush2.msra.mxu0 0.0
    %282 = vmatprep.subr.mxu0 0.0
    %283 = vmatpush2.msra.mxu0 0.0
    %284 = vmatprep.mubr.f32.mxu0 0.0
    %285 = vmatmul.mubr.f32.gmra.mxu0 %v218
    %v286 = vpop.f32.mrf.mxu0
    %v287 = vadd.f32 %v215, %v286
    %v288 = vpop.f32.mrf.mxu0
    %289 = vdwg.mxu0
    %v290 = vmax.f32 %v287, 0.0
    %v291 = vld [vmem:[#allocation8] sm:$0xff]
    %v292 = vld [vmem:[#allocation8 + $0x8] sm:$0xff]
    %v293 = vld [vmem:[#allocation8 + $0x10] sm:$0xff]
    %v294 = vld [vmem:[#allocation8 + $0x18] sm:$0xff]
    %v295 = vld [vmem:[%s8] sm:$0x1]
    %v297 = vlaneseq
    %v298 = vshrl.u32 %v297, 7
    %v299 = vsub.s32 0, %v298
    %v300 = vrot.slane %v295, %v299
    %v303 = vsel %vm98, %v290, 0
    %305 = vmatprep.subr.mxu0 0.0
    %306 = vmatpush1.msra.mxu0 0.0
    %307 = vmatprep.subr.mxu0 0.0
    %308 = vmatpush1.msra.mxu0 0.0
    %309 = vmatprep.subr.mxu0 0.0
    %310 = vmatpush1.msra.mxu0 0.0
    %311 = vmatprep.subr.mxu0 0.0
    %312 = vmatpush1.msra.mxu0 0.0
    %313 = vmatprep.subr.mxu0 0.0
    %314 = vmatpush1.msra.mxu0 0.0
    %315 = vmatprep.subr.mxu0 0.0
    %316 = vmatpush1.msra.mxu0 0.0
    %317 = vmatprep.subr.mxu0 0.0
    %318 = vmatpush1.msra.mxu0 0.0
    %319 = vmatprep.subr.mxu0 0.0
    %320 = vmatpush1.msra.mxu0 0.0
    %321 = vmatprep.subr.mxu0 0.0
    %322 = vmatpush1.msra.mxu0 0.0
    %323 = vmatprep.subr.mxu0 0.0
    %324 = vmatpush1.msra.mxu0 0.0
    %325 = vmatprep.subr.mxu0 0.0
    %326 = vmatpush1.msra.mxu0 0.0
    %327 = vmatprep.subr.mxu0 0.0
    %328 = vmatpush1.msra.mxu0 0.0
    %329 = vmatprep.subr.mxu0 0.0
    %330 = vmatpush1.msra.mxu0 %v294
    %331 = vmatprep.subr.mxu0 0.0
    %332 = vmatpush1.msra.mxu0 %v293
    %333 = vmatprep.subr.mxu0 0.0
    %334 = vmatpush1.msra.mxu0 %v292
    %335 = vmatprep.subr.mxu0 0.0
    %336 = vmatpush1.msra.mxu0 %v291
    %337 = vmatprep.subr.mxu0 0.0
    %338 = vmatpush2.msra.mxu0 0.0
    %339 = vmatprep.subr.mxu0 0.0
    %340 = vmatpush2.msra.mxu0 0.0
    %341 = vmatprep.subr.mxu0 0.0
    %342 = vmatpush2.msra.mxu0 0.0
    %343 = vmatprep.subr.mxu0 0.0
    %344 = vmatpush2.msra.mxu0 0.0
    %345 = vmatprep.subr.mxu0 0.0
    %346 = vmatpush2.msra.mxu0 0.0
    %347 = vmatprep.subr.mxu0 0.0
    %348 = vmatpush2.msra.mxu0 0.0
    %349 = vmatprep.subr.mxu0 0.0
    %350 = vmatpush2.msra.mxu0 0.0
    %351 = vmatprep.subr.mxu0 0.0
    %352 = vmatpush2.msra.mxu0 0.0
    %353 = vmatprep.subr.mxu0 0.0
    %354 = vmatpush2.msra.mxu0 0.0
    %355 = vmatprep.subr.mxu0 0.0
    %356 = vmatpush2.msra.mxu0 0.0
    %357 = vmatprep.subr.mxu0 0.0
    %358 = vmatpush2.msra.mxu0 0.0
    %359 = vmatprep.subr.mxu0 0.0
    %360 = vmatpush2.msra.mxu0 0.0
    %361 = vmatprep.subr.mxu0 0.0
    %362 = vmatpush2.msra.mxu0 0.0
    %363 = vmatprep.subr.mxu0 0.0
    %364 = vmatpush2.msra.mxu0 0.0
    %365 = vmatprep.subr.mxu0 0.0
    %366 = vmatpush2.msra.mxu0 0.0
    %367 = vmatprep.subr.mxu0 0.0
    %368 = vmatpush2.msra.mxu0 0.0
    %369 = vmatprep.mubr.f32.mxu0 0.0
    %370 = vmatmul.mubr.f32.gmra.mxu0 %v303
    %v371 = vpop.f32.mrf.mxu0
    %v372 = vadd.f32 %v300, %v371
    %v373 = vpop.f32.mrf.mxu0
    %374 = vdwg.mxu0
    %v375 = vlaneseq
    %v376 = vand.u32 %v375, 127
    %v377 = vtanh.pop %v372
    %v378 = vadd.f32 %v377, 1.0
    %v379 = vmul.f32 %v378, 6.0
    %v380 = vadd.f32 %v379, -10.0
    %v381 = vmul.f32 %v380, 1.442695
    %v382 = vpow.pop %v381
    %vm383 = vcmp.ge.s32.totalorder %v376, 64
    %v384 = vsel %vm383, %v382, %v372
    %385 = vst [vmem:[#allocation10] sm:$0xff] %v384
    // Predicated region
    $region54: #{tpu_custom_call.1} parent=1 // pred_check
      _
    $region55: #{tpu_custom_call.1} parent=1 // pred_check_branch
      %387 = sbr.rel (0) target = $region57
    $region56: #{tpu_custom_call.1} parent=1 // pred_region
      %s389 = ssub.s32 128, 128
      %390 = vsyncadd [#allocation4], %s389
      %s392 = sshll.u32 [#allocation10], 4
      %s393 = int_to_ptr.vmem [resolvable:$true] %s392
      %395 = dma.vmem_to_hbm [thread:$0]  %s393, 128, %s9, [#allocation4]
    $region57: #{tpu_custom_call.1} parent=1 // pred_fallthru
      _
    // Predicated region
    $region58: #{tpu_custom_call.1} parent=1 // pred_check
      _
    $region59: #{tpu_custom_call.1} parent=1 // pred_check_branch
      %397 = sbr.rel (0) target = $region61
    $region60: #{tpu_custom_call.1} parent=1 // pred_region
      %398 = dma.done [#allocation4], 128
    $region61: #{tpu_custom_call.1} parent=1 // pred_fallthru
      _
    %399 = vsyncpa [#allocation3], 1
    %400 = vsyncpa [#allocation6], 1
    %401 = vsyncpa [#allocation9], 1
    %402 = vsyncpa [#allocation4], 1

// kernel: tpu_custom_call.1
$region0: #{tpu_custom_call.1}
  #allocation0 [shape = 'u32[]', space=smem, size = 0x4, offset = 0x4, fixed_abs, tag = 'smem constant byte address 0x4 - core index']
  #allocation1 [shape = 'u32[144,128]{1,0:T(1,128)}', space=vmem, size = 0x12000, scoped, tag = 'internal scratch']
  %s0 = inlined_call_operand.hbm [shape: f32[8,32], index: 0, kind: input, shape index: {}]
  %s1 = inlined_call_operand.hbm [shape: f32[32,32], index: 1, kind: input, shape index: {}]
  %s2 = inlined_call_operand.vmem [shape: f32[1,32], index: 2, kind: input, shape index: {}]
  %s3 = inlined_call_operand.vmem [shape: f32[1,32], index: 3, kind: input, shape index: {}]
  %s4 = inlined_call_operand.vmem [shape: f32[1,32], index: 4, kind: input, shape index: {}]
  %s5 = inlined_call_operand.hbm [shape: f32[32,32], index: 5, kind: input, shape index: {}]
  %s6 = inlined_call_operand.vmem [shape: f32[1,32], index: 6, kind: input, shape index: {}]
  %s7 = inlined_call_operand.hbm [shape: f32[32,128], index: 7, kind: input, shape index: {}]
  %s8 = inlined_call_operand.vmem [shape: f32[1,128], index: 8, kind: input, shape index: {}]
  %s9 = inlined_call_operand.hbm [shape: f32[8,128], index: 9, kind: output, shape index: {}]
  %s10 = sld [smem:[#allocation0]]
  $region62: #{tpu_custom_call.1} parent=0
    _
  %s12 = ssub.s32 1, %s10
  %s13 = scalar_select 0, %s12, %s10
  $region1: #{tpu_custom_call.1} parent=0
    #allocation2 [shape = 'u8[4096]{0}', space=vmem, size = 0x1000, scoped, tag = 'input window, operand 0, single buffered']
    #allocation3 [shape = 's32[1]{0}', space=sflag, size = 0x4, scoped, tag = 'scoped memory for tpu_custom_call.1']
    #allocation4 [shape = 's32[1]{0}', space=sflag, size = 0x4, scoped, tag = 'scoped memory for tpu_custom_call.1']
    #allocation5 [shape = 'u8[16384]{0}', space=vmem, size = 0x4000, scoped, tag = 'input window, operand 1, single buffered']
    #allocation6 [shape = 's32[1]{0}', space=sflag, size = 0x4, scoped, tag = 'scoped memory for tpu_custom_call.1']
    #allocation7 [shape = 'u8[16384]{0}', space=vmem, size = 0x4000, scoped, tag = 'input window, operand 5, single buffered']
    #allocation8 [shape = 'u8[16384]{0}', space=vmem, size = 0x4000, scoped, tag = 'input window, operand 7, single buffered']
    #allocation9 [shape = 's32[1]{0}', space=sflag, size = 0x4, scoped, tag = 'scoped memory for tpu_custom_call.1']
    #allocation10 [shape = 'u8[4096]{0}', space=vmem, size = 0x1000, scoped, tag = 'output window, operand 0, single buffered']
    %14 = vsyncpa [#allocation3], 0
    %15 = vsyncpa [#allocation6], 0
    %16 = vsyncpa [#allocation9], 0
    %17 = vsyncpa [#allocation4], 0
    // Predicated region
    $region2: #{tpu_custom_call.1} parent=1 // pred_check
      _
    $region3: #{tpu_custom_call.1} parent=1 // pred_check_branch
      %19 = sbr.rel (0) target = $region5
    $region4: #{tpu_custom_call.1} parent=1 // pred_region
      %s21 = ssub.s32 128, 128
      %22 = vsyncadd [#allocation3], %s21
      %s24 = sshll.u32 [#allocation2], 4
      %s25 = int_to_ptr.vmem [resolvable:$true] %s24
      %27 = dma.hbm_to_vmem [thread:$0]  %s0, 128, %s25, [#allocation3]
    $region5: #{tpu_custom_call.1} parent=1 // pred_fallthru
      _
    // Predicated region
    $region6: #{tpu_custom_call.1} parent=1 // pred_check
      _
    $region7: #{tpu_custom_call.1} parent=1 // pred_check_branch
      %29 = sbr.rel (0) target = $region9
    $region8: #{tpu_custom_call.1} parent=1 // pred_region
      %s31 = ssub.s32 512, 512
      %32 = vsyncadd [#allocation6], %s31
      %s33 = sshll.u32 [#allocation5], 4
      %s34 = int_to_ptr.vmem [resolvable:$true] %s33
      %39 = dma.hbm_to_vmem [thread:$0]  %s1, 512, %s34, [#allocation6], 128, 128, 8
    $region9: #{tpu_custom_call.1} parent=1 // pred_fallthru
      _
    // Predicated region
    $region10: #{tpu_custom_call.1} parent=1 // pred_check
      _
    $region11: #{tpu_custom_call.1} parent=1 // pred_check_branch
      %41 = sbr.rel (0) target = $region13
    $region12: #{tpu_custom_call.1} parent=1 // pred_region
      _
    $region13: #{tpu_custom_call.1} parent=1 // pred_fallthru
      _
    // Predicated region
    $region14: #{tpu_custom_call.1} parent=1 // pred_check
      _
    $region15: #{tpu_custom_call.1} parent=1 // pred_check_branch
      %43 = sbr.rel (0) target = $region17
    $region16: #{tpu_custom_call.1} parent=1 // pred_region
      _
    $region17: #{tpu_custom_call.1} parent=1 // pred_fallthru
      _
    // Predicated region
    $region18: #{tpu_custom_call.1} parent=1 // pred_check
      _
    $region19: #{tpu_custom_call.1} parent=1 // pred_check_branch
      %45 = sbr.rel (0) target = $region21
    $region20: #{tpu_custom_call.1} parent=1 // pred_region
      _
    $region21: #{tpu_custom_call.1} parent=1 // pred_fallthru
      _
    // Predicated region
    $region22: #{tpu_custom_call.1} parent=1 // pred_check
      _
    $region23: #{tpu_custom_call.1} parent=1 // pred_check_branch
      %47 = sbr.rel (0) target = $region25
    $region24: #{tpu_custom_call.1} parent=1 // pred_region
      %s49 = ssub.s32 512, 512
      %50 = vsyncadd [#allocation6], %s49
      %s51 = sshll.u32 [#allocation7], 4
      %s52 = int_to_ptr.vmem [resolvable:$true] %s51
      %57 = dma.hbm_to_vmem [thread:$0]  %s5, 512, %s52, [#allocation6], 128, 128, 8
    $region25: #{tpu_custom_call.1} parent=1 // pred_fallthru
      _
    // Predicated region
    $region26: #{tpu_custom_call.1} parent=1 // pred_check
      _
    $region27: #{tpu_custom_call.1} parent=1 // pred_check_branch
      %59 = sbr.rel (0) target = $region29
    $region28: #{tpu_custom_call.1} parent=1 // pred_region
      _
    $region29: #{tpu_custom_call.1} parent=1 // pred_fallthru
      _
    // Predicated region
    $region30: #{tpu_custom_call.1} parent=1 // pred_check
      _
    $region31: #{tpu_custom_call.1} parent=1 // pred_check_branch
      %61 = sbr.rel (0) target = $region33
    $region32: #{tpu_custom_call.1} parent=1 // pred_region
      %s63 = ssub.s32 512, 512
      %64 = vsyncadd [#allocation9], %s63
      %s65 = sshll.u32 [#allocation8], 4
      %s66 = int_to_ptr.vmem [resolvable:$true] %s65
      %71 = dma.hbm_to_vmem [thread:$0]  %s7, 512, %s66, [#allocation9], 128, 128, 8
    $region33: #{tpu_custom_call.1} parent=1 // pred_fallthru
      _
    // Predicated region
    $region34: #{tpu_custom_call.1} parent=1 // pred_check
      _
    $region35: #{tpu_custom_call.1} parent=1 // pred_check_branch
      %73 = sbr.rel (0) target = $region37
    $region36: #{tpu_custom_call.1} parent=1 // pred_region
      _
    $region37: #{tpu_custom_call.1} parent=1 // pred_fallthru
      _
    // Predicated region
    $region38: #{tpu_custom_call.1} parent=1 // pred_check
      _
    $region39: #{tpu_custom_call.1} parent=1 // pred_check_branch
      %75 = sbr.rel (0) target = $region41
    $region40: #{tpu_custom_call.1} parent=1 // pred_region
      %76 = dma.done [#allocation3], 128
    $region41: #{tpu_custom_call.1} parent=1 // pred_fallthru
      _
    // Predicated region
    $region42: #{tpu_custom_call.1} parent=1 // pred_check
      _
    $region43: #{tpu_custom_call.1} parent=1 // pred_check_branch
      %78 = sbr.rel (0) target = $region45
    $region44: #{tpu_custom_call.1} parent=1 // pred_region
      %79 = dma.done [#allocation6], 512
    $region45: #{tpu_custom_call.1} parent=1 // pred_fallthru
      _
    // Predicated region
    $region46: #{tpu_custom_call.1} parent=1 // pred_check
      _
    $region47: #{tpu_custom_call.1} parent=1 // pred_check_branch
      %81 = sbr.rel (0) target = $region49
    $region48: #{tpu_custom_call.1} parent=1 // pred_region
      %82 = dma.done [#allocation6], 512
    $region49: #{tpu_custom_call.1} parent=1 // pred_fallthru
      _
    // Predicated region
    $region50: #{tpu_custom_call.1} parent=1 // pred_check
      _
    $region51: #{tpu_custom_call.1} parent=1 // pred_check_branch
      %84 = sbr.rel (0) target = $region53
    $region52: #{tpu_custom_call.1} parent=1 // pred_region
      %85 = dma.done [#allocation9], 512
    $region53: #{tpu_custom_call.1} parent=1 // pred_fallthru
      _
    %v86 = vld [vmem:[#allocation2] sm:$0xff]
    %v87 = vld [vmem:[#allocation5] sm:$0xff]
    %v88 = vld [vmem:[#allocation5 + $0x8] sm:$0xff]
    %v89 = vld [vmem:[#allocation5 + $0x10] sm:$0xff]
    %v90 = vld [vmem:[#allocation5 + $0x18] sm:$0xff]
    %v91 = vld [vmem:[%s2] sm:$0x1]
    %v93 = vlaneseq
    %v94 = vshrl.u32 %v93, 7
    %v95 = vsub.s32 0, %v94
    %v96 = vrot.slane %v91, %v95
    %vm98 = vcmask 261120
    %v100 = vsel %vm98, %v86, 0
    %102 = vmatprep.subr.mxu0 0.0
    %103 = vmatpush1.msra.mxu0 0.0
    %104 = vmatprep.subr.mxu0 0.0
    %105 = vmatpush1.msra.mxu0 0.0
    %106 = vmatprep.subr.mxu0 0.0
    %107 = vmatpush1.msra.mxu0 0.0
    %108 = vmatprep.subr.mxu0 0.0
    %109 = vmatpush1.msra.mxu0 0.0
    %110 = vmatprep.subr.mxu0 0.0
    %111 = vmatpush1.msra.mxu0 0.0
    %112 = vmatprep.subr.mxu0 0.0
    %113 = vmatpush1.msra.mxu0 0.0
    %114 = vmatprep.subr.mxu0 0.0
    %115 = vmatpush1.msra.mxu0 0.0
    %116 = vmatprep.subr.mxu0 0.0
    %117 = vmatpush1.msra.mxu0 0.0
    %118 = vmatprep.subr.mxu0 0.0
    %119 = vmatpush1.msra.mxu0 0.0
    %120 = vmatprep.subr.mxu0 0.0
    %121 = vmatpush1.msra.mxu0 0.0
    %122 = vmatprep.subr.mxu0 0.0
    %123 = vmatpush1.msra.mxu0 0.0
    %124 = vmatprep.subr.mxu0 0.0
    %125 = vmatpush1.msra.mxu0 0.0
    %126 = vmatprep.subr.mxu0 0.0
    %127 = vmatpush1.msra.mxu0 %v90
    %128 = vmatprep.subr.mxu0 0.0
    %129 = vmatpush1.msra.mxu0 %v89
    %130 = vmatprep.subr.mxu0 0.0
    %131 = vmatpush1.msra.mxu0 %v88
    %132 = vmatprep.subr.mxu0 0.0
    %133 = vmatpush1.msra.mxu0 %v87
    %134 = vmatprep.subr.mxu0 0.0
    %135 = vmatpush2.msra.mxu0 0.0
    %136 = vmatprep.subr.mxu0 0.0
    %137 = vmatpush2.msra.mxu0 0.0
    %138 = vmatprep.subr.mxu0 0.0
    %139 = vmatpush2.msra.mxu0 0.0
    %140 = vmatprep.subr.mxu0 0.0
    %141 = vmatpush2.msra.mxu0 0.0
    %142 = vmatprep.subr.mxu0 0.0
    %143 = vmatpush2.msra.mxu0 0.0
    %144 = vmatprep.subr.mxu0 0.0
    %145 = vmatpush2.msra.mxu0 0.0
    %146 = vmatprep.subr.mxu0 0.0
    %147 = vmatpush2.msra.mxu0 0.0
    %148 = vmatprep.subr.mxu0 0.0
    %149 = vmatpush2.msra.mxu0 0.0
    %150 = vmatprep.subr.mxu0 0.0
    %151 = vmatpush2.msra.mxu0 0.0
    %152 = vmatprep.subr.mxu0 0.0
    %153 = vmatpush2.msra.mxu0 0.0
    %154 = vmatprep.subr.mxu0 0.0
    %155 = vmatpush2.msra.mxu0 0.0
    %156 = vmatprep.subr.mxu0 0.0
    %157 = vmatpush2.msra.mxu0 0.0
    %158 = vmatprep.subr.mxu0 0.0
    %159 = vmatpush2.msra.mxu0 0.0
    %160 = vmatprep.subr.mxu0 0.0
    %161 = vmatpush2.msra.mxu0 0.0
    %162 = vmatprep.subr.mxu0 0.0
    %163 = vmatpush2.msra.mxu0 0.0
    %164 = vmatprep.subr.mxu0 0.0
    %165 = vmatpush2.msra.mxu0 0.0
    %166 = vmatprep.mubr.f32.mxu0 0.0
    %167 = vmatmul.mubr.f32.gmra.mxu0 %v100
    %v168 = vpop.f32.mrf.mxu0
    %v169 = vadd.f32 %v96, %v168
    %v170 = vpop.f32.mrf.mxu0
    %171 = vdwg.mxu0
    %v172 = vsel %vm98, %v169, 0.0
    %173 = vadd.xlane.f32.xlu0 %v172
    %v174 = vpop.xlane.xlu0 %173
    %v175 = vrcp.pop 32.0
    %v176 = vmul.f32 %v174, %v175
    %v177 = vmul.f32 %v169, %v169
    %v178 = vsel %vm98, %v177, 0.0
    %179 = vadd.xlane.f32.xlu0 %v178
    %v180 = vpop.xlane.xlu0 %179
    %v181 = vmul.f32 %v180, %v175
    %v182 = vmul.f32 %v176, %v176
    %v183 = vsub.f32 %v181, %v182
    %v184 = vmax.f32 %v183, 0.0
    %v185 = vadd.f32 %v184, 1e-05
    %v186 = vrsqrt.pop %v185
    %v187 = vsub.f32 %v169, %v176
    %v188 = vmul.f32 %v187, %v186
    %v189 = vld [vmem:[%s3] sm:$0x1]
    %v191 = vlaneseq
    %v192 = vshrl.u32 %v191, 7
    %v193 = vsub.s32 0, %v192
    %v194 = vrot.slane %v189, %v193
    %v196 = vmul.f32 %v188, %v194
    %v197 = vld [vmem:[%s4] sm:$0x1]
    %v199 = vlaneseq
    %v200 = vshrl.u32 %v199, 7
    %v201 = vsub.s32 0, %v200
    %v202 = vrot.slane %v197, %v201
    %v204 = vadd.f32 %v196, %v202
    %v205 = vtanh.pop %v204
    %v206 = vld [vmem:[#allocation7] sm:$0xff]
    %v207 = vld [vmem:[#allocation7 + $0x8] sm:$0xff]
    %v208 = vld [vmem:[#allocation7 + $0x10] sm:$0xff]
    %v209 = vld [vmem:[#allocation7 + $0x18] sm:$0xff]
    %v210 = vld [vmem:[%s6] sm:$0x1]
    %v212 = vlaneseq
    %v213 = vshrl.u32 %v212, 7
    %v214 = vsub.s32 0, %v213
    %v215 = vrot.slane %v210, %v214
    %v218 = vsel %vm98, %v205, 0
    %220 = vmatprep.subr.mxu0 0.0
    %221 = vmatpush1.msra.mxu0 0.0
    %222 = vmatprep.subr.mxu0 0.0
    %223 = vmatpush1.msra.mxu0 0.0
    %224 = vmatprep.subr.mxu0 0.0
    %225 = vmatpush1.msra.mxu0 0.0
    %226 = vmatprep.subr.mxu0 0.0
    %227 = vmatpush1.msra.mxu0 0.0
    %228 = vmatprep.subr.mxu0 0.0
    %229 = vmatpush1.msra.mxu0 0.0
    %230 = vmatprep.subr.mxu0 0.0
    %231 = vmatpush1.msra.mxu0 0.0
    %232 = vmatprep.subr.mxu0 0.0
    %233 = vmatpush1.msra.mxu0 0.0
    %234 = vmatprep.subr.mxu0 0.0
    %235 = vmatpush1.msra.mxu0 0.0
    %236 = vmatprep.subr.mxu0 0.0
    %237 = vmatpush1.msra.mxu0 0.0
    %238 = vmatprep.subr.mxu0 0.0
    %239 = vmatpush1.msra.mxu0 0.0
    %240 = vmatprep.subr.mxu0 0.0
    %241 = vmatpush1.msra.mxu0 0.0
    %242 = vmatprep.subr.mxu0 0.0
    %243 = vmatpush1.msra.mxu0 0.0
    %244 = vmatprep.subr.mxu0 0.0
    %245 = vmatpush1.msra.mxu0 %v209
    %246 = vmatprep.subr.mxu0 0.0
    %247 = vmatpush1.msra.mxu0 %v208
    %248 = vmatprep.subr.mxu0 0.0
    %249 = vmatpush1.msra.mxu0 %v207
    %250 = vmatprep.subr.mxu0 0.0
    %251 = vmatpush1.msra.mxu0 %v206
    %252 = vmatprep.subr.mxu0 0.0
    %253 = vmatpush2.msra.mxu0 0.0
    %254 = vmatprep.subr.mxu0 0.0
    %255 = vmatpush2.msra.mxu0 0.0
    %256 = vmatprep.subr.mxu0 0.0
    %257 = vmatpush2.msra.mxu0 0.0
    %258 = vmatprep.subr.mxu0 0.0
    %259 = vmatpush2.msra.mxu0 0.0
    %260 = vmatprep.subr.mxu0 0.0
    %261 = vmatpush2.msra.mxu0 0.0
    %262 = vmatprep.subr.mxu0 0.0
    %263 = vmatpush2.msra.mxu0 0.0
    %264 = vmatprep.subr.mxu0 0.0
    %265 = vmatpush2.msra.mxu0 0.0
    %266 = vmatprep.subr.mxu0 0.0
    %267 = vmatpush2.msra.mxu0 0.0
    %268 = vmatprep.subr.mxu0 0.0
    %269 = vmatpush2.msra.mxu0 0.0
    %270 = vmatprep.subr.mxu0 0.0
    %271 = vmatpush2.msra.mxu0 0.0
    %272 = vmatprep.subr.mxu0 0.0
    %273 = vmatpush2.msra.mxu0 0.0
    %274 = vmatprep.subr.mxu0 0.0
    %275 = vmatpush2.msra.mxu0 0.0
    %276 = vmatprep.subr.mxu0 0.0
    %277 = vmatpush2.msra.mxu0 0.0
    %278 = vmatprep.subr.mxu0 0.0
    %279 = vmatpush2.msra.mxu0 0.0
    %280 = vmatprep.subr.mxu0 0.0
    %281 = vmatpush2.msra.mxu0 0.0
    %282 = vmatprep.subr.mxu0 0.0
    %283 = vmatpush2.msra.mxu0 0.0
    %284 = vmatprep.mubr.f32.mxu0 0.0
    %285 = vmatmul.mubr.f32.gmra.mxu0 %v218
    %v286 = vpop.f32.mrf.mxu0
    %v287 = vadd.f32 %v215, %v286
    %v288 = vpop.f32.mrf.mxu0
    %289 = vdwg.mxu0
    %v290 = vmax.f32 %v287, 0.0
    %v291 = vld [vmem:[#allocation8] sm:$0xff]
    %v292 = vld [vmem:[#allocation8 + $0x8] sm:$0xff]
    %v293 = vld [vmem:[#allocation8 + $0x10] sm:$0xff]
    %v294 = vld [vmem:[#allocation8 + $0x18] sm:$0xff]
    %v295 = vld [vmem:[%s8] sm:$0x1]
    %v297 = vlaneseq
    %v298 = vshrl.u32 %v297, 7
    %v299 = vsub.s32 0, %v298
    %v300 = vrot.slane %v295, %v299
    %v303 = vsel %vm98, %v290, 0
    %305 = vmatprep.subr.mxu0 0.0
    %306 = vmatpush1.msra.mxu0 0.0
    %307 = vmatprep.subr.mxu0 0.0
    %308 = vmatpush1.msra.mxu0 0.0
    %309 = vmatprep.subr.mxu0 0.0
    %310 = vmatpush1.msra.mxu0 0.0
    %311 = vmatprep.subr.mxu0 0.0
    %312 = vmatpush1.msra.mxu0 0.0
    %313 = vmatprep.subr.mxu0 0.0
    %314 = vmatpush1.msra.mxu0 0.0
    %315 = vmatprep.subr.mxu0 0.0
    %316 = vmatpush1.msra.mxu0 0.0
    %317 = vmatprep.subr.mxu0 0.0
    %318 = vmatpush1.msra.mxu0 0.0
    %319 = vmatprep.subr.mxu0 0.0
    %320 = vmatpush1.msra.mxu0 0.0
    %321 = vmatprep.subr.mxu0 0.0
    %322 = vmatpush1.msra.mxu0 0.0
    %323 = vmatprep.subr.mxu0 0.0
    %324 = vmatpush1.msra.mxu0 0.0
    %325 = vmatprep.subr.mxu0 0.0
    %326 = vmatpush1.msra.mxu0 0.0
    %327 = vmatprep.subr.mxu0 0.0
    %328 = vmatpush1.msra.mxu0 0.0
    %329 = vmatprep.subr.mxu0 0.0
    %330 = vmatpush1.msra.mxu0 %v294
    %331 = vmatprep.subr.mxu0 0.0
    %332 = vmatpush1.msra.mxu0 %v293
    %333 = vmatprep.subr.mxu0 0.0
    %334 = vmatpush1.msra.mxu0 %v292
    %335 = vmatprep.subr.mxu0 0.0
    %336 = vmatpush1.msra.mxu0 %v291
    %337 = vmatprep.subr.mxu0 0.0
    %338 = vmatpush2.msra.mxu0 0.0
    %339 = vmatprep.subr.mxu0 0.0
    %340 = vmatpush2.msra.mxu0 0.0
    %341 = vmatprep.subr.mxu0 0.0
    %342 = vmatpush2.msra.mxu0 0.0
    %343 = vmatprep.subr.mxu0 0.0
    %344 = vmatpush2.msra.mxu0 0.0
    %345 = vmatprep.subr.mxu0 0.0
    %346 = vmatpush2.msra.mxu0 0.0
    %347 = vmatprep.subr.mxu0 0.0
    %348 = vmatpush2.msra.mxu0 0.0
    %349 = vmatprep.subr.mxu0 0.0
    %350 = vmatpush2.msra.mxu0 0.0
    %351 = vmatprep.subr.mxu0 0.0
    %352 = vmatpush2.msra.mxu0 0.0
    %353 = vmatprep.subr.mxu0 0.0
    %354 = vmatpush2.msra.mxu0 0.0
    %355 = vmatprep.subr.mxu0 0.0
    %356 = vmatpush2.msra.mxu0 0.0
    %357 = vmatprep.subr.mxu0 0.0
    %358 = vmatpush2.msra.mxu0 0.0
    %359 = vmatprep.subr.mxu0 0.0
    %360 = vmatpush2.msra.mxu0 0.0
    %361 = vmatprep.subr.mxu0 0.0
    %362 = vmatpush2.msra.mxu0 0.0
    %363 = vmatprep.subr.mxu0 0.0
    %364 = vmatpush2.msra.mxu0 0.0
    %365 = vmatprep.subr.mxu0 0.0
    %366 = vmatpush2.msra.mxu0 0.0
    %367 = vmatprep.subr.mxu0 0.0
    %368 = vmatpush2.msra.mxu0 0.0
    %369 = vmatprep.mubr.f32.mxu0 0.0
    %370 = vmatmul.mubr.f32.gmra.mxu0 %v303
    %v371 = vpop.f32.mrf.mxu0
    %v372 = vadd.f32 %v300, %v371
    %v373 = vpop.f32.mrf.mxu0
    %374 = vdwg.mxu0
    %v375 = vlaneseq
    %v376 = vand.u32 %v375, 127
    %v377 = vtanh.pop %v372
    %v378 = vadd.f32 %v377, 1.0
    %v379 = vmul.f32 %v378, 6.0
    %v380 = vadd.f32 %v379, -10.0
    %v381 = vmul.f32 %v380, 1.442695
    %v382 = vpow.pop %v381
    %vm383 = vcmp.ge.s32.totalorder %v376, 64
    %v384 = vsel %vm383, %v382, %v372
    %385 = vst [vmem:[#allocation10] sm:$0xff] %v384
    // Predicated region
    $region54: #{tpu_custom_call.1} parent=1 // pred_check
      _
    $region55: #{tpu_custom_call.1} parent=1 // pred_check_branch
      %387 = sbr.rel (0) target = $region57
    $region56: #{tpu_custom_call.1} parent=1 // pred_region
      %s389 = ssub.s32 128, 128
      %390 = vsyncadd [#allocation4], %s389
      %s392 = sshll.u32 [#allocation10], 4
      %s393 = int_to_ptr.vmem [resolvable:$true] %s392
      %395 = dma.vmem_to_hbm [thread:$0]  %s393, 128, %s9, [#allocation4]
    $region57: #{tpu_custom_call.1} parent=1 // pred_fallthru
      _
    // Predicated region
    $region58: #{tpu_custom_call.1} parent=1 // pred_check
      _
    $region59: #{tpu_custom_call.1} parent=1 // pred_check_branch
      %397 = sbr.rel (0) target = $region61
    $region60: #{tpu_custom_call.1} parent=1 // pred_region
      %398 = dma.done [#allocation4], 128
    $region61: #{tpu_custom_call.1} parent=1 // pred_fallthru
      _
    %399 = vsyncpa [#allocation3], 1
    %400 = vsyncpa [#allocation6], 1
    %401 = vsyncpa [#allocation9], 1
    %402 = vsyncpa [#allocation4], 1

</llo_original>
